<compile_context>
chip_gen: v7x
topology: tpu7x:2x2x1
jax: 0.10.0
libtpu: 0.0.40
codegen_flags: <defaults>
</compile_context>

<pallas_src>
import numpy as np
import jax
import jax.numpy as jnp
from jax.experimental import pallas as pl
from jax.experimental.pallas import tpu as pltpu

LMAX = 7          # -> harmonic dim (lmax+1)^2 = 64
LANE = 128        # TPU lane width


def _round_up(n, m):
    return ((n + m - 1) // m) * m


def _pick_num_blocks(batch, c, f):
    """1 grid step by default (v5e/v6e are single-TC; per-step overhead ~0.35us
    dwarfs this kernel's compute).  Split into 2 steps only when each step's
    slice of the K=HW matmul is non-trivial and stays sublane-aligned (v7x
    megacore case).
    TODO(synk): on v7x, verify in the trace that the 'parallel' axis actually
    shards across the 2 TensorCores; switch to pltpu.CORE_PARALLEL if not."""
    if batch % 2 == 0:
        block_b = batch // 2
        if (block_b * c >= 128 and (block_b * c) % 8 == 0
                and (block_b * f) % 8 == 0):
            return 2
    return 1


# ---------------------------------------------------------------------------
# Pallas kernel: one grid step == `block_b` batch elements, all 2-D blocks.
# ---------------------------------------------------------------------------
def _i2s_kernel(x_ref, wproj_ref, cb_ref, ys_ref, out_ref):
    BC = x_ref.shape[0]                      # block_b * C
    P = ys_ref.shape[0]
    W1C = _round_up(BC, LANE)                # 128-aligned start of bias region

    # (1) dominant contraction, K = H*W
    u = jnp.dot(x_ref[...], wproj_ref[...],
                preferred_element_type=jnp.float32)          # (BC, P)

    # (2) block-diagonal conv1x1 + reassociated bias, relu (single MXU push)
    w1b = cb_ref[:, :BC]                                     # (BF, BC)
    bz = cb_ref[:, W1C:W1C + P]                              # (BF, P)
    z = jnp.maximum(
        jnp.dot(w1b, u, preferred_element_type=jnp.float32) + bz, 0.0)

    # (3) SH projection (1/sqrt(P) pre-folded); lane-dense unmasked store
    out_ref[...] = jnp.dot(z, ys_ref[...],
                           preferred_element_type=jnp.float32
                           ).astype(out_ref.dtype)


# ---------------------------------------------------------------------------
# Wrapper: host-side folding + pallas_call
# ---------------------------------------------------------------------------
def image2sphere_project(x, w1, b1, wproj_sub, y_sub, *,
                         num_blocks=None, trim_output=True):
    """x: (B, C, H, W) f32; wproj_sub: (H*W, P); y_sub: (P, (lmax+1)^2).
    Returns (B, F, (lmax+1)^2) f32 (or (B, F, 128) padded if trim_output=False)
    -- same semantics as the PyTorch forward."""
    B, C, H, W = x.shape
    HW = H * W
    F = w1.shape[0]
    P = wproj_sub.shape[1]
    I = y_sub.shape[1]
    IPAD = _round_up(I, LANE)

    if num_blocks is None:
        num_blocks = _pick_num_blocks(B, C, F)
    assert B % num_blocks == 0
    block_b = B // num_blocks

    # Pre-flatten activations (free: contiguous reshape) -- kernel sees a
    # rectangular (block_b*C, HW) block in matmul layout, no in-kernel reshape.
    x_flat = x.reshape(B * C, HW).astype(jnp.float32)
    wproj = wproj_sub.astype(jnp.float32)

    # Block-diagonal conv1x1 weight + reassociated bias term
    #   bz = b1 * colsum_hw(Wproj)   (exact; relu happens after spatial sum)
    # coalesced into ONE lane-padded constant buffer with 128-aligned regions.
    colsum = wproj.sum(axis=0)                                          # (P,)
    bz = b1.reshape(F, 1).astype(jnp.float32) * colsum.reshape(1, P)    # (F,P)
    w1_blk = jnp.kron(jnp.eye(block_b, dtype=jnp.float32),
                      w1.astype(jnp.float32))                           # (bF,bC)
    bz_blk = jnp.tile(bz, (block_b, 1))                                 # (bF,P)
    W1C = _round_up(block_b * C, LANE)
    cb = jnp.zeros((block_b * F, W1C + _round_up(P, LANE)), jnp.float32)
    cb = cb.at[:, :block_b * C].set(w1_blk)
    cb = cb.at[:, W1C:W1C + P].set(bz_blk)

    # 1/sqrt(P) folded into the SH basis; lane-padded to 128 so output stores
    # are full, unmasked (8,128) f32 tiles.
    ys = y_sub.astype(jnp.float32) / np.sqrt(P)
    ys_pad = jnp.zeros((P, IPAD), jnp.float32).at[:, :I].set(ys)

    out_pad = pl.pallas_call(
        _i2s_kernel,
        out_shape=jax.ShapeDtypeStruct((B * F, IPAD), jnp.float32),
        grid_spec=pltpu.PrefetchScalarGridSpec(
            num_scalar_prefetch=0,
            grid=(num_blocks,),
            in_specs=[
                pl.BlockSpec((block_b * C, HW), lambda g: (g, 0)),  # activations
                pl.BlockSpec((HW, P), lambda g: (0, 0)),            # gaussian proj
                pl.BlockSpec(cb.shape, lambda g: (0, 0)),           # w1_blk | bz
                pl.BlockSpec((P, IPAD), lambda g: (0, 0)),          # scaled SH basis
            ],
            out_specs=pl.BlockSpec((block_b * F, IPAD), lambda g: (g, 0)),
        ),
        compiler_params=pltpu.CompilerParams(
            dimension_semantics=(("parallel",) if num_blocks > 1
                                 else ("arbitrary",))),
    )(x_flat, wproj, cb, ys_pad)

    out = out_pad.reshape(B, F, IPAD)
    if not trim_output:
        return out     # padded slab; preferred when the consumer can fuse/slice
    return out[..., :I]


# ---------------------------------------------------------------------------
# Deterministic, in-script parameter construction (emulates __init__)
# ---------------------------------------------------------------------------
def build_params(key, c_in, f_out, h, n_pts, coverage=0.9, sigma=0.2,
                 max_beta=np.radians(90.0), taper_beta=np.radians(75.0)):
    k1, k2, k3, k4, k5 = jax.random.split(key, 5)
    # conv1x1 params (Identity case c_in == f_out would use eye / zeros)
    w1 = jax.random.normal(k1, (f_out, c_in), jnp.float32) / np.sqrt(c_in)
    b1 = jax.random.normal(k2, (f_out,), jnp.float32) * 0.01

    # TODO(synk): healpy's s2_healpix_grid has no in-script equivalent; use a
    # deterministic synthetic (alpha, beta) grid of the same shape instead.
    alpha = jax.random.uniform(k3, (n_pts,), minval=0.0, maxval=2.0 * np.pi)
    beta = jax.random.uniform(k4, (n_pts,), minval=0.0, maxval=max_beta)

    # e3nn angles_to_xyz convention: x = sinB sinA, y = cosB, z = sinB cosA
    xyz_x = jnp.sin(beta) * jnp.sin(alpha)
    xyz_z = jnp.sin(beta) * jnp.cos(alpha)
    max_radius = jnp.max(jnp.sqrt(xyz_x ** 2 + xyz_z ** 2))
    sample_x = coverage * xyz_z / max_radius
    sample_y = coverage * xyz_x / max_radius

    lin = jnp.linspace(-1.0, 1.0, h)
    gridx, gridy = jnp.meshgrid(lin, lin, indexing="ij")
    scale = 1.0 / np.sqrt(2.0 * np.pi * sigma ** 2)
    data = scale * jnp.exp(-((gridx[..., None] - sample_x) ** 2
                             + (gridy[..., None] - sample_y) ** 2) / (2.0 * sigma ** 2))
    data = data / data.sum((0, 1), keepdims=True)
    if taper_beta < max_beta:
        mask = jnp.minimum((beta - max_beta) / (taper_beta - max_beta), 1.0)
        mask = mask.reshape(1, 1, -1)
    else:
        mask = jnp.ones_like(data)
    weight = (mask * data).astype(jnp.float32)            # (H, W, n_pts)

    # TODO(synk): e3nn spherical_harmonics_alpha_beta replaced by a
    # deterministic random basis of the same shape (n_pts, (lmax+1)^2).
    Y = jax.random.normal(k5, (n_pts, (LMAX + 1) ** 2), jnp.float32)
    return w1, b1, weight, Y


# ---------------------------------------------------------------------------
if __name__ == "__main__":
    B, C_in, H, W = 2, 4, 16, 16
    sphere_fdim = 8
    n_pts = 48
    n_subset = 20

    key = jax.random.PRNGKey(0)
    kx, kp, kind = jax.random.split(key, 3)
    x = jax.random.normal(kx, (B, C_in, H, W), jnp.float32)       # NCHW, like PyTorch

    w1, b1, weight, Y = build_params(kp, C_in, sphere_fdim, H, n_pts)

    # forward-time random subset (torch.randperm -> deterministic jax permutation)
    ind = jax.random.permutation(kind, n_pts)[:n_subset]
    wproj_sub = weight[:, :, ind].reshape(H * W, n_subset)        # (HW, P)
    y_sub = Y[ind]                                                # (P, (lmax+1)^2)

    out = image2sphere_project(x, w1, b1, wproj_sub, y_sub)
    out = jax.block_until_ready(out)
    assert out.shape == (B, sphere_fdim, (LMAX + 1) ** 2)

    # Reference: full-precision numpy forward with the original op order.
    xn = np.asarray(x, np.float64)
    w1n = np.asarray(w1, np.float64)
    b1n = np.asarray(b1, np.float64)
    wn = np.asarray(weight, np.float64)[:, :, np.asarray(ind)]    # (H, W, P)
    yn = np.asarray(y_sub, np.float64)                            # (P, I)
    y1 = np.einsum("fc,bchw->bfhw", w1n, xn) + b1n.reshape(1, -1, 1, 1)
    zr = np.maximum(np.einsum("bfhw,hwp->bfp", y1, wn), 0.0)
    ref = np.einsum("pi,bfp->bfi", yn, zr) / np.sqrt(n_subset)
    np.testing.assert_allclose(np.asarray(out), ref, rtol=3e-3, atol=2e-3)

    print("KERNEL_OK")
</pallas_src>

<mosaic_0001>
module attributes {stable_mosaic.version = 11 : i64} {
  func.func @_i2s_kernel(%arg0: i32, %arg1: memref<8x256xf32, #tpu.memory_space<vmem>>, %arg2: memref<256x20xf32, #tpu.memory_space<vmem>>, %arg3: memref<16x256xf32, #tpu.memory_space<vmem>>, %arg4: memref<20x128xf32, #tpu.memory_space<vmem>>, %arg5: memref<16x128xf32, #tpu.memory_space<vmem>>) attributes {dimension_semantics = [#tpu.dimension_semantics<arbitrary>], iteration_bounds = array<i64: 1>, scalar_prefetch = 0 : i64, scratch_operands = 0 : i64, tpu.core_type = #tpu.core_type<tc>, window_params = [{transform_indices = @transform_0, window_bounds = array<i64: 8, 256>}, {pipeline_mode = #tpu.pipeline_mode<synchronous>, transform_indices = @transform_1, window_bounds = array<i64: 256, 20>}, {pipeline_mode = #tpu.pipeline_mode<synchronous>, transform_indices = @transform_2, window_bounds = array<i64: 16, 256>}, {pipeline_mode = #tpu.pipeline_mode<synchronous>, transform_indices = @transform_3, window_bounds = array<i64: 20, 128>}, {transform_indices = @transform_4, window_bounds = array<i64: 16, 128>}]} {
    %c0 = arith.constant 0 : index
    %c0_0 = arith.constant 0 : index
    %0 = vector.load %arg1[%c0, %c0_0] : memref<8x256xf32, #tpu.memory_space<vmem>>, vector<8x256xf32>
    %c0_1 = arith.constant 0 : index
    %c0_2 = arith.constant 0 : index
    %1 = vector.load %arg2[%c0_1, %c0_2] : memref<256x20xf32, #tpu.memory_space<vmem>>, vector<256x20xf32>
    %cst = arith.constant dense<0.000000e+00> : vector<8x20xf32>
    %2 = tpu.matmul %0, %1, %cst {dimension_numbers = #tpu.dot_dimension_numbers<[1], [0], [0], [1], [0, 0, 1, 1], [], []>} : vector<8x256xf32>, vector<256x20xf32>, vector<8x20xf32> -> vector<8x20xf32>
    %c0_3 = arith.constant 0 : index
    %c0_4 = arith.constant 0 : index
    %3 = vector.load %arg3[%c0_3, %c0_4] : memref<16x256xf32, #tpu.memory_space<vmem>>, vector<16x8xf32>
    %c0_5 = arith.constant 0 : index
    %c128 = arith.constant 128 : index
    %4 = vector.load %arg3[%c0_5, %c128] : memref<16x256xf32, #tpu.memory_space<vmem>>, vector<16x20xf32>
    %cst_6 = arith.constant dense<0.000000e+00> : vector<16x20xf32>
    %5 = tpu.matmul %3, %2, %cst_6 {dimension_numbers = #tpu.dot_dimension_numbers<[1], [0], [0], [1], [0, 0, 1, 1], [], []>} : vector<16x8xf32>, vector<8x20xf32>, vector<16x20xf32> -> vector<16x20xf32>
    %6 = arith.addf %5, %4 : vector<16x20xf32>
    %cst_7 = arith.constant 0.000000e+00 : f32
    %7 = vector.broadcast %cst_7 : f32 to vector<16x20xf32>
    %8 = arith.maximumf %6, %7 : vector<16x20xf32>
    %c0_8 = arith.constant 0 : index
    %c0_9 = arith.constant 0 : index
    %9 = vector.load %arg4[%c0_8, %c0_9] : memref<20x128xf32, #tpu.memory_space<vmem>>, vector<20x128xf32>
    %cst_10 = arith.constant dense<0.000000e+00> : vector<16x128xf32>
    %10 = tpu.matmul %8, %9, %cst_10 {dimension_numbers = #tpu.dot_dimension_numbers<[1], [0], [0], [1], [0, 0, 1, 1], [], []>} : vector<16x20xf32>, vector<20x128xf32>, vector<16x128xf32> -> vector<16x128xf32>
    %c0_11 = arith.constant 0 : index
    %c0_12 = arith.constant 0 : index
    %11 = vector.load %arg5[%c0_11, %c0_12] : memref<16x128xf32, #tpu.memory_space<vmem>>, vector<16x128xf32>
    tpu.vector_store %arg5[%c0_11, %c0_12], %10 {strides = array<i32>} : memref<16x128xf32, #tpu.memory_space<vmem>>, vector<16x128xf32>,
    return
  }
  func.func @transform_0(%arg0: i32) -> (i32, i32) {
    %c0_i32 = arith.constant 0 : i32
    %c0_i32_0 = arith.constant 0 : i32
    return %arg0, %c0_i32 : i32, i32
  }
  func.func @transform_1(%arg0: i32) -> (i32, i32) {
    %c0_i32 = arith.constant 0 : i32
    %c0_i32_0 = arith.constant 0 : i32
    %c0_i32_1 = arith.constant 0 : i32
    return %c0_i32, %c0_i32_0 : i32, i32
  }
  func.func @transform_2(%arg0: i32) -> (i32, i32) {
    %c0_i32 = arith.constant 0 : i32
    %c0_i32_0 = arith.constant 0 : i32
    %c0_i32_1 = arith.constant 0 : i32
    return %c0_i32, %c0_i32_0 : i32, i32
  }
  func.func @transform_3(%arg0: i32) -> (i32, i32) {
    %c0_i32 = arith.constant 0 : i32
    %c0_i32_0 = arith.constant 0 : i32
    %c0_i32_1 = arith.constant 0 : i32
    return %c0_i32, %c0_i32_0 : i32, i32
  }
  func.func @transform_4(%arg0: i32) -> (i32, i32) {
    %c0_i32 = arith.constant 0 : i32
    %c0_i32_0 = arith.constant 0 : i32
    return %arg0, %c0_i32 : i32, i32
  }
}

</mosaic_0001>

<llo_original>
// kernel: tpu_custom_call.1
$region0: #{tpu_custom_call.1}
  #allocation0 [shape = 'u32[]', space=smem, size = 0x4, offset = 0x4, fixed_abs, tag = 'smem constant byte address 0x4 - core index']
  #allocation1 [shape = 'u32[144,128]{1,0:T(1,128)}', space=vmem, size = 0x12000, scoped, tag = 'internal scratch']
  %s0 = inlined_call_operand.vmem [shape: f32[8,256], index: 0, kind: input, shape index: {}]
  %s1 = inlined_call_operand.vmem [shape: f32[256,20], index: 1, kind: input, shape index: {}]
  %s2 = inlined_call_operand.vmem [shape: f32[16,256], index: 2, kind: input, shape index: {}]
  %s3 = inlined_call_operand.vmem [shape: f32[20,128], index: 3, kind: input, shape index: {}]
  %s4 = inlined_call_operand.hbm [shape: f32[16,128], index: 4, kind: output, shape index: {}]
  %s5 = sld [smem:[#allocation0]]
  $region26: #{tpu_custom_call.1} parent=0
    _
  %s7 = ssub.s32 1, %s5
  %s8 = scalar_select 0, %s7, %s5
  $region1: #{tpu_custom_call.1} parent=0
    #allocation2 [shape = 'u8[8192]{0}', space=vmem, size = 0x2000, scoped, tag = 'output window, operand 0, single buffered']
    #allocation3 [shape = 's32[1]{0}', space=sflag, size = 0x4, scoped, tag = 'scoped memory for tpu_custom_call.1']
    %9 = vsyncpa [#allocation3], 0
    // Predicated region
    $region2: #{tpu_custom_call.1} parent=1 // pred_check
      _
    $region3: #{tpu_custom_call.1} parent=1 // pred_check_branch
      %11 = sbr.rel (0) target = $region5
    $region4: #{tpu_custom_call.1} parent=1 // pred_region
      _
    $region5: #{tpu_custom_call.1} parent=1 // pred_fallthru
      _
    // Predicated region
    $region6: #{tpu_custom_call.1} parent=1 // pred_check
      _
    $region7: #{tpu_custom_call.1} parent=1 // pred_check_branch
      %13 = sbr.rel (0) target = $region9
    $region8: #{tpu_custom_call.1} parent=1 // pred_region
      _
    $region9: #{tpu_custom_call.1} parent=1 // pred_fallthru
      _
    // Predicated region
    $region10: #{tpu_custom_call.1} parent=1 // pred_check
      _
    $region11: #{tpu_custom_call.1} parent=1 // pred_check_branch
      %15 = sbr.rel (0) target = $region13
    $region12: #{tpu_custom_call.1} parent=1 // pred_region
      _
    $region13: #{tpu_custom_call.1} parent=1 // pred_fallthru
      _
    // Predicated region
    $region14: #{tpu_custom_call.1} parent=1 // pred_check
      _
    $region15: #{tpu_custom_call.1} parent=1 // pred_check_branch
      %17 = sbr.rel (0) target = $region17
    $region16: #{tpu_custom_call.1} parent=1 // pred_region
      _
    $region17: #{tpu_custom_call.1} parent=1 // pred_fallthru
      _
    %v18 = vld [vmem:[%s0] sm:$0xff]
    %v19 = vld [vmem:[%s0 + $0x8] sm:$0xff]
    %v20 = vld [vmem:[%s1] sm:$0xff]
    %v21 = vld [vmem:[%s1 + $0x8] sm:$0xff]
    %v22 = vld [vmem:[%s1 + $0x10] sm:$0xff]
    %v23 = vld [vmem:[%s1 + $0x18] sm:$0xff]
    %v24 = vld [vmem:[%s1 + $0x20] sm:$0xff]
    %v25 = vld [vmem:[%s1 + $0x28] sm:$0xff]
    %v26 = vld [vmem:[%s1 + $0x30] sm:$0xff]
    %v27 = vld [vmem:[%s1 + $0x38] sm:$0xff]
    %v28 = vld [vmem:[%s1 + $0x40] sm:$0xff]
    %v29 = vld [vmem:[%s1 + $0x48] sm:$0xff]
    %v30 = vld [vmem:[%s1 + $0x50] sm:$0xff]
    %v31 = vld [vmem:[%s1 + $0x58] sm:$0xff]
    %v32 = vld [vmem:[%s1 + $0x60] sm:$0xff]
    %v33 = vld [vmem:[%s1 + $0x68] sm:$0xff]
    %v34 = vld [vmem:[%s1 + $0x70] sm:$0xff]
    %v35 = vld [vmem:[%s1 + $0x78] sm:$0xff]
    %v36 = vld [vmem:[%s1 + $0x80] sm:$0xff]
    %v37 = vld [vmem:[%s1 + $0x88] sm:$0xff]
    %v38 = vld [vmem:[%s1 + $0x90] sm:$0xff]
    %v39 = vld [vmem:[%s1 + $0x98] sm:$0xff]
    %v40 = vld [vmem:[%s1 + $0xa0] sm:$0xff]
    %v41 = vld [vmem:[%s1 + $0xa8] sm:$0xff]
    %v42 = vld [vmem:[%s1 + $0xb0] sm:$0xff]
    %v43 = vld [vmem:[%s1 + $0xb8] sm:$0xff]
    %v44 = vld [vmem:[%s1 + $0xc0] sm:$0xff]
    %v45 = vld [vmem:[%s1 + $0xc8] sm:$0xff]
    %v46 = vld [vmem:[%s1 + $0xd0] sm:$0xff]
    %v47 = vld [vmem:[%s1 + $0xd8] sm:$0xff]
    %v48 = vld [vmem:[%s1 + $0xe0] sm:$0xff]
    %v49 = vld [vmem:[%s1 + $0xe8] sm:$0xff]
    %v50 = vld [vmem:[%s1 + $0xf0] sm:$0xff]
    %v51 = vld [vmem:[%s1 + $0xf8] sm:$0xff]
    %52 = vmatprep.subr.mxu0 0.0
    %53 = vmatpush1.msra.mxu0 %v20
    %54 = vmatprep.subr.mxu0 0.0
    %55 = vmatpush1.msra.mxu0 %v21
    %56 = vmatprep.subr.mxu0 0.0
    %57 = vmatpush1.msra.mxu0 %v22
    %58 = vmatprep.subr.mxu0 0.0
    %59 = vmatpush1.msra.mxu0 %v23
    %60 = vmatprep.subr.mxu0 0.0
    %61 = vmatpush1.msra.mxu0 %v24
    %62 = vmatprep.subr.mxu0 0.0
    %63 = vmatpush1.msra.mxu0 %v25
    %64 = vmatprep.subr.mxu0 0.0
    %65 = vmatpush1.msra.mxu0 %v26
    %66 = vmatprep.subr.mxu0 0.0
    %67 = vmatpush1.msra.mxu0 %v27
    %68 = vmatprep.subr.mxu0 0.0
    %69 = vmatpush1.msra.mxu0 %v28
    %70 = vmatprep.subr.mxu0 0.0
    %71 = vmatpush1.msra.mxu0 %v29
    %72 = vmatprep.subr.mxu0 0.0
    %73 = vmatpush1.msra.mxu0 %v30
    %74 = vmatprep.subr.mxu0 0.0
    %75 = vmatpush1.msra.mxu0 %v31
    %76 = vmatprep.subr.mxu0 0.0
    %77 = vmatpush1.msra.mxu0 %v32
    %78 = vmatprep.subr.mxu0 0.0
    %79 = vmatpush1.msra.mxu0 %v33
    %80 = vmatprep.subr.mxu0 0.0
    %81 = vmatpush1.msra.mxu0 %v34
    %82 = vmatprep.subr.mxu0 0.0
    %83 = vmatpush1.msra.mxu0 %v35
    %84 = vmatprep.subr.mxu0 0.0
    %85 = vmatpush1.msra.mxu0 %v36
    %86 = vmatprep.subr.mxu0 0.0
    %87 = vmatpush1.msra.mxu0 %v37
    %88 = vmatprep.subr.mxu0 0.0
    %89 = vmatpush1.msra.mxu0 %v38
    %90 = vmatprep.subr.mxu0 0.0
    %91 = vmatpush1.msra.mxu0 %v39
    %92 = vmatprep.subr.mxu0 0.0
    %93 = vmatpush1.msra.mxu0 %v40
    %94 = vmatprep.subr.mxu0 0.0
    %95 = vmatpush1.msra.mxu0 %v41
    %96 = vmatprep.subr.mxu0 0.0
    %97 = vmatpush1.msra.mxu0 %v42
    %98 = vmatprep.subr.mxu0 0.0
    %99 = vmatpush1.msra.mxu0 %v43
    %100 = vmatprep.subr.mxu0 0.0
    %101 = vmatpush1.msra.mxu0 %v44
    %102 = vmatprep.subr.mxu0 0.0
    %103 = vmatpush1.msra.mxu0 %v45
    %104 = vmatprep.subr.mxu0 0.0
    %105 = vmatpush1.msra.mxu0 %v46
    %106 = vmatprep.subr.mxu0 0.0
    %107 = vmatpush1.msra.mxu0 %v47
    %108 = vmatprep.subr.mxu0 0.0
    %109 = vmatpush1.msra.mxu0 %v48
    %110 = vmatprep.subr.mxu0 0.0
    %111 = vmatpush1.msra.mxu0 %v49
    %112 = vmatprep.subr.mxu0 0.0
    %113 = vmatpush1.msra.mxu0 %v50
    %114 = vmatprep.subr.mxu0 0.0
    %115 = vmatpush1.msra.mxu0 %v51
    %116 = vmatprep.mubr.f32.mxu0 %v19
    %117 = vmatmul.mubr.f32.gmra.mrb[0].mxu0 %v18
    %v118 = vpop.f32.mrb[0].mxu0
    %v119 = vadd.f32 0.0, %v118
    %v120 = vpop.f32.mrb[0].mxu0
    %121 = vdwg.mxu0
    %v122 = vld [vmem:[%s2] sm:$0xff]
    %v123 = vld [vmem:[%s2 + $0x10] sm:$0xff]
    %v124 = vld [vmem:[%s2 + $0x8] sm:$0xff]
    %v125 = vld [vmem:[%s2 + $0x18] sm:$0xff]
    %vm126 = vcmask 64512
    %v128 = vsel %vm126, %v122, 0
    %v131 = vsel %vm126, %v123, 0
    %133 = vmatprep.subr.mxu0 0.0
    %134 = vmatpush1.msra.mxu0 %v119
    %135 = vmatprep.subr.mxu0 0.0
    %136 = vmatpush1.msra.mxu0 0.0
    %137 = vmatprep.subr.mxu0 0.0
    %138 = vmatpush1.msra.mxu0 0.0
    %139 = vmatprep.subr.mxu0 0.0
    %140 = vmatpush1.msra.mxu0 0.0
    %141 = vmatprep.subr.mxu0 0.0
    %142 = vmatpush1.msra.mxu0 0.0
    %143 = vmatprep.subr.mxu0 0.0
    %144 = vmatpush1.msra.mxu0 0.0
    %145 = vmatprep.subr.mxu0 0.0
    %146 = vmatpush1.msra.mxu0 0.0
    %147 = vmatprep.subr.mxu0 0.0
    %148 = vmatpush1.msra.mxu0 0.0
    %149 = vmatprep.subr.mxu0 0.0
    %150 = vmatpush1.msra.mxu0 0.0
    %151 = vmatprep.subr.mxu0 0.0
    %152 = vmatpush1.msra.mxu0 0.0
    %153 = vmatprep.subr.mxu0 0.0
    %154 = vmatpush1.msra.mxu0 0.0
    %155 = vmatprep.subr.mxu0 0.0
    %156 = vmatpush1.msra.mxu0 0.0
    %157 = vmatprep.subr.mxu0 0.0
    %158 = vmatpush1.msra.mxu0 0.0
    %159 = vmatprep.subr.mxu0 0.0
    %160 = vmatpush1.msra.mxu0 0.0
    %161 = vmatprep.subr.mxu0 0.0
    %162 = vmatpush1.msra.mxu0 0.0
    %163 = vmatprep.subr.mxu0 0.0
    %164 = vmatpush1.msra.mxu0 0.0
    %165 = vmatprep.subr.mxu0 0.0
    %166 = vmatpush1.msra.mxu0 0.0
    %167 = vmatprep.subr.mxu0 0.0
    %168 = vmatpush1.msra.mxu0 0.0
    %169 = vmatprep.subr.mxu0 0.0
    %170 = vmatpush1.msra.mxu0 0.0
    %171 = vmatprep.subr.mxu0 0.0
    %172 = vmatpush1.msra.mxu0 0.0
    %173 = vmatprep.subr.mxu0 0.0
    %174 = vmatpush1.msra.mxu0 0.0
    %175 = vmatprep.subr.mxu0 0.0
    %176 = vmatpush1.msra.mxu0 0.0
    %177 = vmatprep.subr.mxu0 0.0
    %178 = vmatpush1.msra.mxu0 0.0
    %179 = vmatprep.subr.mxu0 0.0
    %180 = vmatpush1.msra.mxu0 0.0
    %181 = vmatprep.subr.mxu0 0.0
    %182 = vmatpush1.msra.mxu0 0.0
    %183 = vmatprep.subr.mxu0 0.0
    %184 = vmatpush1.msra.mxu0 0.0
    %185 = vmatprep.subr.mxu0 0.0
    %186 = vmatpush1.msra.mxu0 0.0
    %187 = vmatprep.subr.mxu0 0.0
    %188 = vmatpush1.msra.mxu0 0.0
    %189 = vmatprep.subr.mxu0 0.0
    %190 = vmatpush1.msra.mxu0 0.0
    %191 = vmatprep.subr.mxu0 0.0
    %192 = vmatpush1.msra.mxu0 0.0
    %193 = vmatprep.subr.mxu0 0.0
    %194 = vmatpush1.msra.mxu0 0.0
    %195 = vmatprep.subr.mxu0 0.0
    %196 = vmatpush1.msra.mxu0 0.0
    %197 = vmatprep.mubr.f32.mxu0 0.0
    %198 = vmatmul.mubr.f32.gmra.mrb[0].mxu0 %v128
    %v199 = vpop.f32.mrb[0].mxu0
    %v200 = vadd.f32 %v124, %v199
    %v201 = vpop.f32.mrb[0].mxu0
    %202 = vmatprep.mubr.f32.mxu0 0.0
    %203 = vmatmul.mubr.f32.gmra.mrb[0].mxu0 %v131
    %v204 = vpop.f32.mrb[0].mxu0
    %v205 = vadd.f32 %v125, %v204
    %v206 = vpop.f32.mrb[0].mxu0
    %207 = vdwg.mxu0
    %v208 = vmax.f32 %v200, 0.0
    %v209 = vmax.f32 %v205, 0.0
    %v210 = vld [vmem:[%s3] sm:$0xff]
    %v211 = vld [vmem:[%s3 + $0x8] sm:$0xff]
    %v212 = vld [vmem:[%s3 + $0x10] sm:$0xf]
    %vm213 = vcmask 162816
    %v215 = vsel %vm213, %v208, 0
    %v218 = vsel %vm213, %v209, 0
    %vm220 = vcmask 1043456
    %v222 = vsel %vm220, %v212, 0
    %224 = vmatprep.subr.mxu0 0.0
    %225 = vmatpush1.msra.mxu0 %v210
    %226 = vmatprep.subr.mxu0 0.0
    %227 = vmatpush1.msra.mxu0 %v211
    %228 = vmatprep.subr.mxu0 0.0
    %229 = vmatpush1.msra.mxu0 %v222
    %230 = vmatprep.subr.mxu0 0.0
    %231 = vmatpush1.msra.mxu0 0.0
    %232 = vmatprep.subr.mxu0 0.0
    %233 = vmatpush1.msra.mxu0 0.0
    %234 = vmatprep.subr.mxu0 0.0
    %235 = vmatpush1.msra.mxu0 0.0
    %236 = vmatprep.subr.mxu0 0.0
    %237 = vmatpush1.msra.mxu0 0.0
    %238 = vmatprep.subr.mxu0 0.0
    %239 = vmatpush1.msra.mxu0 0.0
    %240 = vmatprep.subr.mxu0 0.0
    %241 = vmatpush1.msra.mxu0 0.0
    %242 = vmatprep.subr.mxu0 0.0
    %243 = vmatpush1.msra.mxu0 0.0
    %244 = vmatprep.subr.mxu0 0.0
    %245 = vmatpush1.msra.mxu0 0.0
    %246 = vmatprep.subr.mxu0 0.0
    %247 = vmatpush1.msra.mxu0 0.0
    %248 = vmatprep.subr.mxu0 0.0
    %249 = vmatpush1.msra.mxu0 0.0
    %250 = vmatprep.subr.mxu0 0.0
    %251 = vmatpush1.msra.mxu0 0.0
    %252 = vmatprep.subr.mxu0 0.0
    %253 = vmatpush1.msra.mxu0 0.0
    %254 = vmatprep.subr.mxu0 0.0
    %255 = vmatpush1.msra.mxu0 0.0
    %256 = vmatprep.subr.mxu0 0.0
    %257 = vmatpush1.msra.mxu0 0.0
    %258 = vmatprep.subr.mxu0 0.0
    %259 = vmatpush1.msra.mxu0 0.0
    %260 = vmatprep.subr.mxu0 0.0
    %261 = vmatpush1.msra.mxu0 0.0
    %262 = vmatprep.subr.mxu0 0.0
    %263 = vmatpush1.msra.mxu0 0.0
    %264 = vmatprep.subr.mxu0 0.0
    %265 = vmatpush1.msra.mxu0 0.0
    %266 = vmatprep.subr.mxu0 0.0
    %267 = vmatpush1.msra.mxu0 0.0
    %268 = vmatprep.subr.mxu0 0.0
    %269 = vmatpush1.msra.mxu0 0.0
    %270 = vmatprep.subr.mxu0 0.0
    %271 = vmatpush1.msra.mxu0 0.0
    %272 = vmatprep.subr.mxu0 0.0
    %273 = vmatpush1.msra.mxu0 0.0
    %274 = vmatprep.subr.mxu0 0.0
    %275 = vmatpush1.msra.mxu0 0.0
    %276 = vmatprep.subr.mxu0 0.0
    %277 = vmatpush1.msra.mxu0 0.0
    %278 = vmatprep.subr.mxu0 0.0
    %279 = vmatpush1.msra.mxu0 0.0
    %280 = vmatprep.subr.mxu0 0.0
    %281 = vmatpush1.msra.mxu0 0.0
    %282 = vmatprep.subr.mxu0 0.0
    %283 = vmatpush1.msra.mxu0 0.0
    %284 = vmatprep.subr.mxu0 0.0
    %285 = vmatpush1.msra.mxu0 0.0
    %286 = vmatprep.subr.mxu0 0.0
    %287 = vmatpush1.msra.mxu0 0.0
    %288 = vmatprep.mubr.f32.mxu0 0.0
    %289 = vmatmul.mubr.f32.gmra.mrb[0].mxu0 %v215
    %v290 = vpop.f32.mrb[0].mxu0
    %v291 = vadd.f32 0.0, %v290
    %v292 = vpop.f32.mrb[0].mxu0
    %293 = vmatprep.mubr.f32.mxu0 0.0
    %294 = vmatmul.mubr.f32.gmra.mrb[0].mxu0 %v218
    %v295 = vpop.f32.mrb[0].mxu0
    %v296 = vadd.f32 0.0, %v295
    %v297 = vpop.f32.mrb[0].mxu0
    %298 = vdwg.mxu0
    %299 = vst [vmem:[#allocation2] sm:$0xff] %v291
    %300 = vst [vmem:[#allocation2 + $0x8] sm:$0xff] %v296
    // Predicated region
    $region18: #{tpu_custom_call.1} parent=1 // pred_check
      _
    $region19: #{tpu_custom_call.1} parent=1 // pred_check_branch
      %302 = sbr.rel (0) target = $region21
    $region20: #{tpu_custom_call.1} parent=1 // pred_region
      %s304 = ssub.s32 256, 256
      %305 = vsyncadd [#allocation3], %s304
      %s306 = sshll.u32 [#allocation2], 4
      %s307 = int_to_ptr.vmem [resolvable:$true] %s306
      %312 = dma.vmem_to_hbm [thread:$0]  %s307, 256, %s4, [#allocation3], 128, 128, 8
    $region21: #{tpu_custom_call.1} parent=1 // pred_fallthru
      _
    // Predicated region
    $region22: #{tpu_custom_call.1} parent=1 // pred_check
      _
    $region23: #{tpu_custom_call.1} parent=1 // pred_check_branch
      %314 = sbr.rel (0) target = $region25
    $region24: #{tpu_custom_call.1} parent=1 // pred_region
      %315 = dma.done [#allocation3], 256
    $region25: #{tpu_custom_call.1} parent=1 // pred_fallthru
      _
    %316 = vsyncpa [#allocation3], 1

</llo_original>
